<compile_context>
chip_gen: v7x
topology: tpu7x:2x2x1
jax: 0.10.0
libtpu: 0.0.40
codegen_flags: <defaults>
</compile_context>

<pallas_src>
import functools
import math

import jax
import jax.numpy as jnp
from jax import lax
from jax.experimental import pallas as pl
from jax.experimental.pallas import tpu as pltpu

_LANES = 128
_SUBLANES = 8
# Double-buffered (input + output) tile budget; fits v5e's 16 MiB scoped VMEM
# default with headroom, and is far under v6e (32 MiB) / v7x (32 MiB scoped).
_VMEM_BUDGET_BYTES = 12 * 1024 * 1024
_VMEM_LIMIT_BYTES = 32 * 1024 * 1024


def _ceil_to(x: int, m: int) -> int:
    return ((x + m - 1) // m) * m


def _choose_rows(total_rows: int, *, out_row_bytes: int, in_row_bytes: int) -> int:
    """Rows per block: lane-padding-aware VMEM budget, >=2 grid steps when possible."""
    per_row = 2 * (out_row_bytes + in_row_bytes)          # double-buffered in + out
    tb = max(_SUBLANES, (_VMEM_BUDGET_BYTES // per_row) // _SUBLANES * _SUBLANES)
    if total_rows > tb:
        # Large input: also cap at ~half the rows so the grid has >= 2 blocks
        # (dimension_semantics="parallel" only uses both v7x TCs with >1 step).
        half_rows = _ceil_to((total_rows + 1) // 2, _SUBLANES)
        return min(tb, max(_SUBLANES, half_rows))
    # Single block covering everything (block == full array dim is always legal).
    return total_rows


# ----------------------------------------------------------------------------
# Packed lane-dense path: dim < 128 and dim divides 128 (so dim is a power of 2).
# Output is produced via the contiguous view (batch*dim/128, 128).
# ----------------------------------------------------------------------------
def _packed_kernel(t_ref, out_ref, *, dim: int, scale: float):
    # t_ref:   (TBr, R)   f32 — the R = 128//dim timesteps packed into each output row
    # out_ref: (TBr, 128) f32 — lane-dense packed view of the (batch, dim) output
    half = dim // 2
    r = _LANES // dim
    shift = dim.bit_length() - 1                      # log2(dim); dim | 128 => power of 2

    lane = lax.broadcasted_iota(jnp.int32, (1, _LANES), 1)
    d = lane & (dim - 1)                              # position within each dim-wide group
    is_cos = d >= half
    freq_idx = (d & (half - 1)).astype(jnp.float32)   # d % half
    freq_row = jnp.exp(freq_idx * (-scale))           # (1, 128); loop-invariant EUP exp

    # Spread the R timesteps of each packed row across their dim-wide lane groups.
    # R static VPU selects + lane broadcasts — avoids any in-kernel minor-dim reshape.
    group = lane >> shift                             # which of the R timesteps a lane uses
    t_rep = t_ref[:, 0:1]
    for k in range(1, r):
        t_rep = jnp.where(group == k, t_ref[:, k:k + 1], t_rep)

    args = t_rep * freq_row                           # (TBr, 128), full lane utilization
    # Exact sin/cos (bit-matches the reference); single full-width unmasked store.
    out_ref[...] = jnp.where(is_cos, jnp.cos(args), jnp.sin(args))


def _packed_path(t: jax.Array, dim: int, scale: float) -> jax.Array:
    batch = t.shape[0]
    r = _LANES // dim
    padded_b = _ceil_to(batch, r)                     # minimal pad (<= R-1 rows)
    if padded_b != batch:
        t = jnp.pad(t, (0, padded_b - batch))
    n_rows = padded_b * dim // _LANES
    t_packed = t.reshape(n_rows, r)

    # Lane padding: both the (TBr, R) input tile and the (TBr, 128) output tile
    # occupy 128 lanes * 4 B per row in VMEM.
    tbr = _choose_rows(n_rows, out_row_bytes=_LANES * 4, in_row_bytes=_LANES * 4)

    out_packed = pl.pallas_call(
        functools.partial(_packed_kernel, dim=dim, scale=scale),
        out_shape=jax.ShapeDtypeStruct((n_rows, _LANES), jnp.float32),
        grid=(pl.cdiv(n_rows, tbr),),
        in_specs=[pl.BlockSpec((tbr, r), lambda i: (i, 0))],
        out_specs=pl.BlockSpec((tbr, _LANES), lambda i: (i, 0)),
        compiler_params=pltpu.CompilerParams(
            dimension_semantics=("parallel",),
            vmem_limit_bytes=_VMEM_LIMIT_BYTES,
        ),
    )(t_packed)

    out = out_packed.reshape(padded_b, dim)           # contiguous reshape: free
    if padded_b != batch:
        out = out[:batch]                             # at most R-1 pad rows
    return out


# ----------------------------------------------------------------------------
# General path: dim >= 128 (lane-dense already) or dim not dividing 128.
# No padding, no trailing slice; ragged grid handled by Pallas masking.
# ----------------------------------------------------------------------------
def _general_kernel(t_ref, out_ref, *, dim: int, scale: float):
    # t_ref:   (TB, 1)   f32
    # out_ref: (TB, dim) f32 — out[:, :half]=sin(t*f), out[:, half:]=cos(t*f)
    half = dim // 2
    idx = lax.broadcasted_iota(jnp.int32, (1, half), 1).astype(jnp.float32)
    freqs = jnp.exp(idx * (-scale))                   # (1, half); tiny EUP cost per step
    args = t_ref[...] * freqs                         # (TB, half)
    s = jnp.sin(args)
    c = jnp.cos(args)
    if half % _LANES == 0:
        # Lane-aligned half offset -> two unmasked stores, no concat temporary.
        out_ref[:, :half] = s
        out_ref[:, half:] = c
    else:
        # Unaligned half offset -> one full-width store via an XLU concat
        # (avoids masked/unaligned vst on the scarce store slot).
        out_ref[...] = jnp.concatenate([s, c], axis=-1)


def _general_path(t: jax.Array, dim: int, scale: float) -> jax.Array:
    batch = t.shape[0]
    t2d = t.reshape(batch, 1)
    out_row_bytes = _ceil_to(dim, _LANES) * 4         # lane-padded output row
    in_row_bytes = _LANES * 4                         # (TB,1) tile pads to 128 lanes
    tb = _choose_rows(batch, out_row_bytes=out_row_bytes, in_row_bytes=in_row_bytes)

    return pl.pallas_call(
        functools.partial(_general_kernel, dim=dim, scale=scale),
        out_shape=jax.ShapeDtypeStruct((batch, dim), jnp.float32),
        grid=(pl.cdiv(batch, tb),),
        in_specs=[pl.BlockSpec((tb, 1), lambda i: (i, 0))],
        out_specs=pl.BlockSpec((tb, dim), lambda i: (i, 0)),
        compiler_params=pltpu.CompilerParams(
            dimension_semantics=("parallel",),
            vmem_limit_bytes=_VMEM_LIMIT_BYTES,
        ),
    )(t2d)


def sinusoidal_position_embeddings(
    time: jax.Array, dim: int, *, min_pallas_bytes: int = 0
) -> jax.Array:
    """time: (batch,) float -> (batch, dim) f32, matching torch.cat((sin, cos), -1).

    min_pallas_bytes: if the output is smaller than this, fall back to the plain
    jnp expression (XLA fuses it for free).  The perf review recommends ~1 MiB
    in production; default 0 keeps the Pallas path active for testing.
    """
    assert dim % 2 == 0 and dim >= 4, "dim must be even and >= 4"
    batch = time.shape[0]
    if batch * dim * 4 < min_pallas_bytes:
        return _reference(time, dim)

    half = dim // 2
    scale = math.log(10000.0) / (half - 1)
    t = time.astype(jnp.float32)

    if dim < _LANES and _LANES % dim == 0:
        return _packed_path(t, dim, scale)
    return _general_path(t, dim, scale)


def _reference(time: jax.Array, dim: int) -> jax.Array:
    half = dim // 2
    scale = math.log(10000.0) / (half - 1)
    freqs = jnp.exp(jnp.arange(half, dtype=jnp.float32) * (-scale))
    args = time[:, None].astype(jnp.float32) * freqs[None, :]
    return jnp.concatenate([jnp.sin(args), jnp.cos(args)], axis=-1)


if __name__ == "__main__":
    # Primary small-shape check (typical diffusion use): packed lane-dense path,
    # exercises the R=4 lane spread and the minimal pad + tiny slice.
    key = jax.random.PRNGKey(0)
    batch, dim = 2, 32
    time = jax.random.uniform(key, (batch,), jnp.float32, 0.0, 1000.0)
    out = jax.block_until_ready(sinusoidal_position_embeddings(time, dim))
    ref = _reference(time, dim)
    assert out.shape == (batch, dim)
    assert out.dtype == jnp.float32
    assert jnp.allclose(out, ref, atol=1e-5, rtol=1e-5)

    # Packed path with R=2, batch already a multiple of R (no pad, no slice).
    key2 = jax.random.PRNGKey(1)
    batch2, dim2 = 100, 64
    time2 = jax.random.uniform(key2, (batch2,), jnp.float32, 0.0, 1000.0)
    out2 = jax.block_until_ready(sinusoidal_position_embeddings(time2, dim2))
    assert out2.shape == (batch2, dim2)
    assert jnp.allclose(out2, _reference(time2, dim2), atol=1e-5, rtol=1e-5)

    # General path (dim >= 128): lane-aligned half-slice stores, no pad/slice.
    key3 = jax.random.PRNGKey(2)
    batch3, dim3 = 20, 256
    time3 = jax.random.uniform(key3, (batch3,), jnp.float32, 0.0, 1000.0)
    out3 = jax.block_until_ready(sinusoidal_position_embeddings(time3, dim3))
    assert out3.shape == (batch3, dim3)
    assert jnp.allclose(out3, _reference(time3, dim3), atol=1e-5, rtol=1e-5)

    print("KERNEL_OK")
</pallas_src>

<mosaic_0001>
module attributes {stable_mosaic.version = 11 : i64} {
  func.func @_packed_kernel(%arg0: i32, %arg1: memref<1x4xf32, #tpu.memory_space<vmem>>, %arg2: memref<1x128xf32, #tpu.memory_space<vmem>>) attributes {dimension_semantics = [#tpu.dimension_semantics<parallel>], iteration_bounds = array<i64: 1>, scalar_prefetch = 0 : i64, scratch_operands = 0 : i64, tpu.core_type = #tpu.core_type<tc>, window_params = [{transform_indices = @transform_0, window_bounds = array<i64: 1, 4>}, {transform_indices = @transform_1, window_bounds = array<i64: 1, 128>}]} {
    %0 = tpu.iota {dimensions = array<i32: 1>} : vector<1x128xi32>
    %c31_i32 = arith.constant 31 : i32
    %1 = vector.broadcast %c31_i32 : i32 to vector<1x128xi32>
    %2 = arith.andi %0, %1 : vector<1x128xi32>
    %c16_i32 = arith.constant 16 : i32
    %3 = vector.broadcast %c16_i32 : i32 to vector<1x128xi32>
    %4 = arith.cmpi sge, %2, %3 : vector<1x128xi32>
    %c15_i32 = arith.constant 15 : i32
    %5 = vector.broadcast %c15_i32 : i32 to vector<1x128xi32>
    %6 = arith.andi %2, %5 : vector<1x128xi32>
    %7 = arith.sitofp %6 : vector<1x128xi32> to vector<1x128xf32>
    %cst = arith.constant -0.614022672 : f32
    %8 = vector.broadcast %cst : f32 to vector<1x128xf32>
    %9 = arith.mulf %7, %8 : vector<1x128xf32>
    %10 = math.exp %9 : vector<1x128xf32>
    %c5_i32 = arith.constant 5 : i32
    %11 = vector.broadcast %c5_i32 : i32 to vector<1x128xi32>
    %12 = arith.shrsi %0, %11 : vector<1x128xi32>
    %c0 = arith.constant 0 : index
    %c0_0 = arith.constant 0 : index
    %13 = vector.load %arg1[%c0, %c0_0] : memref<1x4xf32, #tpu.memory_space<vmem>>, vector<1x1xf32>
    %c1_i32 = arith.constant 1 : i32
    %14 = vector.broadcast %c1_i32 : i32 to vector<1x128xi32>
    %15 = arith.cmpi eq, %12, %14 : vector<1x128xi32>
    %c0_1 = arith.constant 0 : index
    %c1 = arith.constant 1 : index
    %16 = vector.load %arg1[%c0_1, %c1] : memref<1x4xf32, #tpu.memory_space<vmem>>, vector<1x1xf32>
    %17 = vector.shape_cast %16 : vector<1x1xf32> to vector<1x1xf32>
    %18 = vector.broadcast %17 : vector<1x1xf32> to vector<1x128xf32>
    %19 = vector.shape_cast %13 : vector<1x1xf32> to vector<1x1xf32>
    %20 = vector.broadcast %19 : vector<1x1xf32> to vector<1x128xf32>
    %21 = arith.select %15, %18, %20 : vector<1x128xi1>, vector<1x128xf32>
    %c2_i32 = arith.constant 2 : i32
    %22 = vector.broadcast %c2_i32 : i32 to vector<1x128xi32>
    %23 = arith.cmpi eq, %12, %22 : vector<1x128xi32>
    %c0_2 = arith.constant 0 : index
    %c2 = arith.constant 2 : index
    %24 = vector.load %arg1[%c0_2, %c2] : memref<1x4xf32, #tpu.memory_space<vmem>>, vector<1x1xf32>
    %25 = vector.shape_cast %24 : vector<1x1xf32> to vector<1x1xf32>
    %26 = vector.broadcast %25 : vector<1x1xf32> to vector<1x128xf32>
    %27 = arith.select %23, %26, %21 : vector<1x128xi1>, vector<1x128xf32>
    %c3_i32 = arith.constant 3 : i32
    %28 = vector.broadcast %c3_i32 : i32 to vector<1x128xi32>
    %29 = arith.cmpi eq, %12, %28 : vector<1x128xi32>
    %c0_3 = arith.constant 0 : index
    %c3 = arith.constant 3 : index
    %30 = vector.load %arg1[%c0_3, %c3] : memref<1x4xf32, #tpu.memory_space<vmem>>, vector<1x1xf32>
    %31 = vector.shape_cast %30 : vector<1x1xf32> to vector<1x1xf32>
    %32 = vector.broadcast %31 : vector<1x1xf32> to vector<1x128xf32>
    %33 = arith.select %29, %32, %27 : vector<1x128xi1>, vector<1x128xf32>
    %34 = arith.mulf %33, %10 : vector<1x128xf32>
    %35 = math.cos %34 : vector<1x128xf32>
    %36 = math.sin %34 : vector<1x128xf32>
    %37 = arith.select %4, %35, %36 : vector<1x128xi1>, vector<1x128xf32>
    %c0_4 = arith.constant 0 : index
    %c0_5 = arith.constant 0 : index
    %38 = vector.load %arg2[%c0_4, %c0_5] : memref<1x128xf32, #tpu.memory_space<vmem>>, vector<1x128xf32>
    tpu.vector_store %arg2[%c0_4, %c0_5], %37 {strides = array<i32>} : memref<1x128xf32, #tpu.memory_space<vmem>>, vector<1x128xf32>,
    return
  }
  func.func @transform_0(%arg0: i32) -> (i32, i32) {
    %c0_i32 = arith.constant 0 : i32
    %c0_i32_0 = arith.constant 0 : i32
    return %arg0, %c0_i32 : i32, i32
  }
  func.func @transform_1(%arg0: i32) -> (i32, i32) {
    %c0_i32 = arith.constant 0 : i32
    %c0_i32_0 = arith.constant 0 : i32
    return %arg0, %c0_i32 : i32, i32
  }
}

</mosaic_0001>

<llo_original>
// kernel: tpu_custom_call.1
$region0: #{tpu_custom_call.1}
  #allocation0 [shape = 'u32[]', space=smem, size = 0x4, offset = 0x4, fixed_abs, tag = 'smem constant byte address 0x4 - core index']
  #allocation1 [shape = 'u32[144,128]{1,0:T(1,128)}', space=vmem, size = 0x12000, scoped, tag = 'internal scratch']
  %s0 = inlined_call_operand.hbm [shape: f32[1,4], index: 0, kind: input, shape index: {}]
  %s1 = inlined_call_operand.hbm [shape: f32[1,128], index: 1, kind: output, shape index: {}]
  %s2 = sld [smem:[#allocation0]]
  $region18: #{tpu_custom_call.1} parent=0
    _
  %s4 = ssub.s32 1, %s2
  %s5 = scalar_select 0, %s4, %s2
  $region1: #{tpu_custom_call.1} parent=0
    #allocation2 [shape = 'u8[512]{0}', space=vmem, size = 0x400, scoped, tag = 'input window, operand 0, single buffered']
    #allocation3 [shape = 's32[1]{0}', space=sflag, size = 0x4, scoped, tag = 'scoped memory for tpu_custom_call.1']
    #allocation4 [shape = 's32[1]{0}', space=sflag, size = 0x4, scoped, tag = 'scoped memory for tpu_custom_call.1']
    #allocation5 [shape = 'u8[512]{0}', space=vmem, size = 0x400, scoped, tag = 'output window, operand 0, single buffered']
    %6 = vsyncpa [#allocation3], 0
    %7 = vsyncpa [#allocation4], 0
    // Predicated region
    $region2: #{tpu_custom_call.1} parent=1 // pred_check
      _
    $region3: #{tpu_custom_call.1} parent=1 // pred_check_branch
      %9 = sbr.rel (0) target = $region5
    $region4: #{tpu_custom_call.1} parent=1 // pred_region
      %s11 = ssub.s32 16, 16
      %12 = vsyncadd [#allocation3], %s11
      %s14 = sshll.u32 [#allocation2], 4
      %s15 = int_to_ptr.vmem [resolvable:$true] %s14
      %17 = dma.hbm_to_vmem [thread:$0]  %s0, 16, %s15, [#allocation3]
    $region5: #{tpu_custom_call.1} parent=1 // pred_fallthru
      _
    // Predicated region
    $region6: #{tpu_custom_call.1} parent=1 // pred_check
      _
    $region7: #{tpu_custom_call.1} parent=1 // pred_check_branch
      %19 = sbr.rel (0) target = $region9
    $region8: #{tpu_custom_call.1} parent=1 // pred_region
      %20 = dma.done [#allocation3], 16
    $region9: #{tpu_custom_call.1} parent=1 // pred_fallthru
      _
    %v21 = vlaneseq
    %v22 = vand.u32 %v21, 127
    %v23 = vand.u32 %v22, 31
    %vm24 = vcmp.ge.s32.totalorder %v23, 16
    %v25 = vand.u32 %v23, 15
    %v26 = vcvt.s32.f32 %v25
    %v27 = vmul.f32 %v26, -0.6140227
    %v28 = vmul.f32 %v27, 1.442695
    %v29 = vpow.pop %v28
    %v30 = vshra.s32 %v22, 5
    %v31 = vld [vmem:[#allocation2] sm:$0x1]
    %vm32 = vcmp.eq.s32.totalorder %v30, 1
    %34 = vset.pattern.permute.xlu0 1
    %35 = vperm.xlu0 %34, %v31
    %v36 = vpop.permute.xlu0 %35
    %v38 = vlaneseq
    %v39 = vshrl.u32 %v38, 7
    %v40 = vsub.s32 0, %v39
    %v41 = vrot.slane %v36, %v40
    %42 = vset.pattern.permute.xlu0 0
    %43 = vperm.xlu0 %42, %v31
    %v44 = vpop.permute.xlu0 %43
    %v46 = vlaneseq
    %v47 = vshrl.u32 %v46, 7
    %v48 = vsub.s32 0, %v47
    %v49 = vrot.slane %v44, %v48
    %v50 = vsel %vm32, %v41, %v49
    %vm51 = vcmp.eq.s32.totalorder %v30, 2
    %52 = vset.pattern.permute.xlu0 2
    %53 = vperm.xlu0 %52, %v31
    %v54 = vpop.permute.xlu0 %53
    %v56 = vlaneseq
    %v57 = vshrl.u32 %v56, 7
    %v58 = vsub.s32 0, %v57
    %v59 = vrot.slane %v54, %v58
    %v60 = vsel %vm51, %v59, %v50
    %vm61 = vcmp.eq.s32.totalorder %v30, 3
    %62 = vset.pattern.permute.xlu0 3
    %63 = vperm.xlu0 %62, %v31
    %v64 = vpop.permute.xlu0 %63
    %v66 = vlaneseq
    %v67 = vshrl.u32 %v66, 7
    %v68 = vsub.s32 0, %v67
    %v69 = vrot.slane %v64, %v68
    %v70 = vsel %vm61, %v69, %v60
    %v71 = vmul.f32 %v70, %v29
    %v72 = vand.u32 2147483647, %v71
    %vm73 = vcmp.le.f32.partialorder %v72, 0.7853982
    %vm74 = vcmp.lt.s32.totalorder %v71, 0
    %v75 = vand.u32 %v71, 2139095040
    %v76 = vshrl.u32 %v75, 23
    %v77 = vsub.s32 %v76, 127
    %v78 = vand.u32 2147483647, %v71
    %v79 = vand.u32 %v78, 8388607
    %v80 = vor.u32 %v79, 8388608
    %v81 = vsub.s32 0, %v80
    %v82 = vadd.s32 %v77, 1
    %vm83 = vcmp.gt.s32.totalorder %v82, 0
    %v84 = vsel %vm83, %v82, 0
    %v85 = vshrl.u32 %v84, 5
    %v86 = vand.u32 %v84, 31
    %v87 = vsub.s32 32, %v86
    %v88 = vshrl.u32 683565275, %v87
    %v89 = vshll.u32 683565275, %v86
    %v90 = vshrl.u32 2475754826, %v87
    %v91 = vor.u32 %v89, %v90
    %v92 = vshll.u32 2475754826, %v86
    %v93 = vshrl.u32 2131351028, %v87
    %v94 = vor.u32 %v92, %v93
    %v95 = vshll.u32 2131351028, %v86
    %v96 = vshrl.u32 2102212464, %v87
    %v97 = vor.u32 %v95, %v96
    %v98 = vshll.u32 2102212464, %v86
    %v99 = vshrl.u32 920167782, %v87
    %v100 = vor.u32 %v98, %v99
    %v101 = vshll.u32 920167782, %v86
    %v102 = vshrl.u32 1326507024, %v87
    %v103 = vor.u32 %v101, %v102
    %vm104 = vcmp.lt.s32.totalorder %v85, 1
    %vm105 = vcmp.lt.s32.totalorder %v85, 2
    %vm106 = vcmp.lt.s32.totalorder %v85, 3
    %vm107 = vcmp.lt.s32.totalorder %v85, 4
    %v108 = vsel %vm104, %v88, %v91
    %v109 = vsel %vm107, %v97, 2102212464
    %v110 = vsel %vm106, %v94, %v109
    %v111 = vsel %vm105, %v108, %v110
    %v112 = vsel %vm104, %v91, %v94
    %v113 = vsel %vm107, %v100, 920167782
    %v114 = vsel %vm106, %v97, %v113
    %v115 = vsel %vm105, %v112, %v114
    %v116 = vsel %vm104, %v94, %v97
    %v117 = vsel %vm107, %v103, 1326507024
    %v118 = vsel %vm106, %v100, %v117
    %v119 = vsel %vm105, %v116, %v118
    %v120 = vshll.u32 %v80, 8
    %v121 = vmul.u32.u64.compose %v120, %v119
    %v122 = vextract.low.u32 %v121
    %v123 = vextract.high.u32 %v121
    %v124 = vmul.u32.u64.compose %v120, %v115
    %v125 = vextract.low.u32 %v124
    %v126 = vextract.high.u32 %v124
    %v127 = vmul.u32 %v120, %v111
    %v128 = vadd.s32 %v123, %v125
    %vm129 = vc.u32 %v123, %v125
    %v130 = vadd.s32 %v126, 1
    %v131 = vsel %vm129, %v130, %v126
    %v132 = vadd.s32 %v127, %v131
    %v133 = vadd.s32 %v132, 536870912
    %v134 = vshrl.u32 %v133, 30
    %v135 = vshll.u32 %v134, 30
    %v136 = vsub.s32 %v132, %v135
    %vm137 = vcmp.lt.s32.totalorder %v136, 0
    %v138 = vsub.s32 0, %v136
    %v139 = vsel %vm137, %v138, %v136
    %v140 = vclz %v139
    %v141 = vsub.s32 %v140, 2
    %vm142 = vcmp.gt.s32.totalorder 0, %v141
    %v143 = vsel %vm142, 0, %v141
    %v144 = vsub.s32 32, %v143
    %v145 = vshll.u32 %v136, %v143
    %v146 = vshrl.u32 %v128, %v144
    %v147 = vor.u32 %v145, %v146
    %v148 = vsub.s32 4294967266, %v143
    %v149 = vadd.s32 %v148, 127
    %v150 = vshll.u32 %v149, 23
    %v151 = vor.u32 4788187, %v150
    %v152 = vand.u32 2147483647, %v151
    %v154 = vcvt.s32.f32 %v147
    %v155 = vmul.f32 %v154, %v152
    %v156 = vxor.u32 %v155, 2147483648
    %v157 = vsel %vm74, %v156, %v155
    %v158 = vsub.s32 4, %v134
    %v159 = vsel %vm74, %v158, %v134
    %v160 = vsel %vm73, %v71, %v157
    %v161 = vsel %vm73, 0, %v159
    %v162 = vcosq.f32.pop %v160
    %v163 = vsinq.f32.pop %v160
    %vm164 = vweird.f32 %v71
    %v165 = vand.u32 %v161, 3
    %vm166 = vcmp.lt.s32.totalorder %v165, 2
    %vm167 = vcmp.eq.s32.totalorder %v165, 0
    %v168 = vxor.u32 %v163, 2147483648
    %v169 = vsel %vm167, %v162, %v168
    %vm170 = vcmp.eq.s32.totalorder %v165, 2
    %v171 = vxor.u32 %v162, 2147483648
    %v172 = vsel %vm170, %v171, %v163
    %v173 = vsel %vm166, %v169, %v172
    %v174 = vsel %vm164, nan, %v173
    %v175 = vand.u32 2147483647, %v71
    %vm176 = vcmp.le.f32.partialorder %v175, 0.7853982
    %vm177 = vcmp.lt.s32.totalorder %v71, 0
    %v178 = vand.u32 %v71, 2139095040
    %v179 = vshrl.u32 %v178, 23
    %v180 = vsub.s32 %v179, 127
    %v181 = vand.u32 2147483647, %v71
    %v182 = vand.u32 %v181, 8388607
    %v183 = vor.u32 %v182, 8388608
    %v184 = vsub.s32 0, %v183
    %v185 = vadd.s32 %v180, 1
    %vm186 = vcmp.gt.s32.totalorder %v185, 0
    %v187 = vsel %vm186, %v185, 0
    %v188 = vshrl.u32 %v187, 5
    %v189 = vand.u32 %v187, 31
    %v190 = vsub.s32 32, %v189
    %v191 = vshrl.u32 683565275, %v190
    %v192 = vshll.u32 683565275, %v189
    %v193 = vshrl.u32 2475754826, %v190
    %v194 = vor.u32 %v192, %v193
    %v195 = vshll.u32 2475754826, %v189
    %v196 = vshrl.u32 2131351028, %v190
    %v197 = vor.u32 %v195, %v196
    %v198 = vshll.u32 2131351028, %v189
    %v199 = vshrl.u32 2102212464, %v190
    %v200 = vor.u32 %v198, %v199
    %v201 = vshll.u32 2102212464, %v189
    %v202 = vshrl.u32 920167782, %v190
    %v203 = vor.u32 %v201, %v202
    %v204 = vshll.u32 920167782, %v189
    %v205 = vshrl.u32 1326507024, %v190
    %v206 = vor.u32 %v204, %v205
    %vm207 = vcmp.lt.s32.totalorder %v188, 1
    %vm208 = vcmp.lt.s32.totalorder %v188, 2
    %vm209 = vcmp.lt.s32.totalorder %v188, 3
    %vm210 = vcmp.lt.s32.totalorder %v188, 4
    %v211 = vsel %vm207, %v191, %v194
    %v212 = vsel %vm210, %v200, 2102212464
    %v213 = vsel %vm209, %v197, %v212
    %v214 = vsel %vm208, %v211, %v213
    %v215 = vsel %vm207, %v194, %v197
    %v216 = vsel %vm210, %v203, 920167782
    %v217 = vsel %vm209, %v200, %v216
    %v218 = vsel %vm208, %v215, %v217
    %v219 = vsel %vm207, %v197, %v200
    %v220 = vsel %vm210, %v206, 1326507024
    %v221 = vsel %vm209, %v203, %v220
    %v222 = vsel %vm208, %v219, %v221
    %v223 = vshll.u32 %v183, 8
    %v224 = vmul.u32.u64.compose %v223, %v222
    %v225 = vextract.low.u32 %v224
    %v226 = vextract.high.u32 %v224
    %v227 = vmul.u32.u64.compose %v223, %v218
    %v228 = vextract.low.u32 %v227
    %v229 = vextract.high.u32 %v227
    %v230 = vmul.u32 %v223, %v214
    %v231 = vadd.s32 %v226, %v228
    %vm232 = vc.u32 %v226, %v228
    %v233 = vadd.s32 %v229, 1
    %v234 = vsel %vm232, %v233, %v229
    %v235 = vadd.s32 %v230, %v234
    %v236 = vadd.s32 %v235, 536870912
    %v237 = vshrl.u32 %v236, 30
    %v238 = vshll.u32 %v237, 30
    %v239 = vsub.s32 %v235, %v238
    %vm240 = vcmp.lt.s32.totalorder %v239, 0
    %v241 = vsub.s32 0, %v239
    %v242 = vsel %vm240, %v241, %v239
    %v243 = vclz %v242
    %v244 = vsub.s32 %v243, 2
    %vm245 = vcmp.gt.s32.totalorder 0, %v244
    %v246 = vsel %vm245, 0, %v244
    %v247 = vsub.s32 32, %v246
    %v248 = vshll.u32 %v239, %v246
    %v249 = vshrl.u32 %v231, %v247
    %v250 = vor.u32 %v248, %v249
    %v251 = vsub.s32 4294967266, %v246
    %v252 = vadd.s32 %v251, 127
    %v253 = vshll.u32 %v252, 23
    %v254 = vor.u32 4788187, %v253
    %v255 = vand.u32 2147483647, %v254
    %v257 = vcvt.s32.f32 %v250
    %v258 = vmul.f32 %v257, %v255
    %v259 = vxor.u32 %v258, 2147483648
    %v260 = vsel %vm177, %v259, %v258
    %v261 = vsub.s32 4, %v237
    %v262 = vsel %vm177, %v261, %v237
    %v263 = vsel %vm176, %v71, %v260
    %v264 = vsel %vm176, 0, %v262
    %v265 = vcosq.f32.pop %v263
    %v266 = vsinq.f32.pop %v263
    %vm267 = vweird.f32 %v71
    %v268 = vadd.s32 %v264, 3
    %v269 = vand.u32 %v268, 3
    %vm270 = vcmp.lt.s32.totalorder %v269, 2
    %vm271 = vcmp.eq.s32.totalorder %v269, 0
    %v272 = vxor.u32 %v266, 2147483648
    %v273 = vsel %vm271, %v265, %v272
    %vm274 = vcmp.eq.s32.totalorder %v269, 2
    %v275 = vxor.u32 %v265, 2147483648
    %v276 = vsel %vm274, %v275, %v266
    %v277 = vsel %vm270, %v273, %v276
    %v278 = vsel %vm267, nan, %v277
    %v279 = vsel %vm24, %v174, %v278
    %280 = vst [vmem:[#allocation5] sm:$0x1] %v279
    // Predicated region
    $region10: #{tpu_custom_call.1} parent=1 // pred_check
      _
    $region11: #{tpu_custom_call.1} parent=1 // pred_check_branch
      %282 = sbr.rel (0) target = $region13
    $region12: #{tpu_custom_call.1} parent=1 // pred_region
      %s284 = ssub.s32 16, 16
      %285 = vsyncadd [#allocation4], %s284
      %s287 = sshll.u32 [#allocation5], 4
      %s288 = int_to_ptr.vmem [resolvable:$true] %s287
      %290 = dma.vmem_to_hbm [thread:$0]  %s288, 16, %s1, [#allocation4]
    $region13: #{tpu_custom_call.1} parent=1 // pred_fallthru
      _
    // Predicated region
    $region14: #{tpu_custom_call.1} parent=1 // pred_check
      _
    $region15: #{tpu_custom_call.1} parent=1 // pred_check_branch
      %292 = sbr.rel (0) target = $region17
    $region16: #{tpu_custom_call.1} parent=1 // pred_region
      %293 = dma.done [#allocation4], 16
    $region17: #{tpu_custom_call.1} parent=1 // pred_fallthru
      _
    %294 = vsyncpa [#allocation3], 1
    %295 = vsyncpa [#allocation4], 1

</llo_original>
